<compile_context>
chip_gen: v6e
topology: v6e:2x2x1
jax: 0.10.0
libtpu: 0.0.40
codegen_flags: <defaults>
</compile_context>

<pallas_src>
import functools

import jax
import jax.numpy as jnp
from jax import lax
from jax.experimental import pallas as pl
from jax.experimental.pallas import tpu as pltpu


_F32_MIN = float(jnp.finfo(jnp.float32).min)


def _css_kernel(scale_ref, probs_ref, feats_ref, out_ref, m_ref, s_ref,
                *, t_hw, hw_valid, mask_tail):
    """One (batch, channel-block) pass; the HW axis is grid axis 2 (streamed).

    scale_ref: (1,)        SMEM scalar
    probs_ref: (K, t_hw)   streamed probs tile
    feats_ref: (t_c, t_hw) streamed feats tile
    out_ref:   (K, t_c)    resident f32 accumulator / output block
    m_ref/s_ref: (K, 1)    running max / running sum (f32 scratch)
    """
    n = pl.program_id(2)
    scale = scale_ref[0]

    @pl.when(n == 0)
    def _init():
        m_ref[...] = jnp.full_like(m_ref, _F32_MIN)
        s_ref[...] = jnp.zeros_like(s_ref)
        out_ref[...] = jnp.zeros_like(out_ref)

    # Logits for this HW tile, f32 math, lane-dense along HW.
    z = scale * probs_ref[...].astype(jnp.float32)                  # (K, t_hw)
    if mask_tail:
        col = n * t_hw + lax.broadcasted_iota(jnp.int32, z.shape, 1)
        valid = col < hw_valid
        z = jnp.where(valid, z, _F32_MIN)      # keep pad out of the running max

    # Online (flash-style) softmax statistics.
    m_old = m_ref[...]
    m_new = jnp.maximum(m_old, jnp.max(z, axis=-1, keepdims=True))  # (K, 1)
    alpha = jnp.exp(m_old - m_new)                                  # (K, 1)
    e = jnp.exp(z - m_new)                                          # (K, t_hw)
    if mask_tail:
        e = jnp.where(valid, e, 0.0)

    s_ref[...] = alpha * s_ref[...] + jnp.sum(e, axis=-1, keepdims=True)
    m_ref[...] = m_new

    # (K, t_hw) x (t_c, t_hw) -> (K, t_c) on the MXU, contracting the HW tile
    # (large feats operand stays untouched; same contraction form as q@k^T in
    # the canonical flash-attention kernel).
    f_tile = feats_ref[...]                                         # (t_c, t_hw)
    contrib = lax.dot_general(
        e.astype(f_tile.dtype), f_tile,
        dimension_numbers=(((1,), (1,)), ((), ())),
        preferred_element_type=jnp.float32)                         # (K, t_c)
    out_ref[...] = alpha * out_ref[...] + contrib

    @pl.when(n == pl.num_programs(2) - 1)
    def _finalize():
        # Runs once per (batch, channel-block); exact reciprocal on (K, 1).
        out_ref[...] = out_ref[...] * pl.reciprocal(s_ref[...], approx=False)


def _tpu_defaults():
    """Generation-aware tile-size / VMEM settings, keyed off VMEM capacity."""
    vmem_phys = 64 << 20   # conservative default if the query fails
    try:
        info = pltpu.get_tpu_info()
        vmem_phys = int(getattr(info, "vmem_capacity_bytes", vmem_phys))
    except Exception:
        pass
    if vmem_phys <= (80 << 20):
        # v7x-like: 64 MiB VMEM, ~3.2 TB/s HBM, 2 TensorCores per chip.
        return dict(target_tile_bytes=6 << 20, vmem_cap=56 << 20, two_cores=True)
    # v5e / v6e: 128 MiB physical VMEM, 1 TensorCore.
    return dict(target_tile_bytes=4 << 20, vmem_cap=100 << 20, two_cores=False)


def _pick_t_hw(hw_pad, bytes_per_col, target_tile_bytes):
    """Largest multiple of 128 dividing hw_pad whose slab stays under
    target_tile_bytes.  hw_pad is always a multiple of 128."""
    cap = max(128, (target_tile_bytes // max(1, bytes_per_col)) // 128 * 128)
    if hw_pad <= cap:
        return hw_pad
    best, t = 128, 128
    while t <= cap:
        if hw_pad % t == 0:
            best = t
        t += 128
    return best


def css_forward(feats, probs, scale, *, t_hw=None, t_c=None,
                target_tile_bytes=None):
    """feats: (B, C, H, W), probs: (B, K, H, W) -> (B, C, K, 1) float32.

    Matches CSS.forward.  `scale` may be a Python number or a traced scalar
    (it reaches the kernel through SMEM).
    NOTE: the kernel is HBM-bound on feats; if the producing layer can emit
    feats in bf16, call this directly on the bf16 array (do NOT add a
    standalone cast here — that costs an extra full HBM pass).
    """
    B, K, H, W = probs.shape
    Bf, C, Hf, Wf = feats.shape
    assert (B, H, W) == (Bf, Hf, Wf), (probs.shape, feats.shape)
    HW = H * W

    cfg = _tpu_defaults()
    if target_tile_bytes is None:
        target_tile_bytes = cfg["target_tile_bytes"]

    f_item = jnp.dtype(feats.dtype).itemsize
    p_item = jnp.dtype(probs.dtype).itemsize

    # Channel blocking: lets both v7x TensorCores stream disjoint channel slabs
    # when the batch alone cannot occupy two cores.  (8,128) layout rules
    # require t_c to be a multiple of 128 (last dim of the output block).
    if t_c is None:
        t_c = C
        if cfg["two_cores"] and B % 2 == 1 and C % 256 == 0:
            t_c = C // 2
    assert t_c == C or (C % t_c == 0 and t_c % 128 == 0), (C, t_c)
    n_c = C // t_c

    # HW tiling: pad HW up to a multiple of 128, then stream t_hw slabs.
    hw_pad = ((HW + 127) // 128) * 128
    if t_hw is None:
        t_hw = _pick_t_hw(hw_pad, t_c * f_item + K * p_item, target_tile_bytes)
    assert t_hw % 128 == 0 and hw_pad % t_hw == 0, (hw_pad, t_hw)
    n_hw = hw_pad // t_hw
    mask_tail = hw_pad != HW

    probs_flat = probs.reshape(B, K, HW)     # metadata-only reshape
    feats_flat = feats.reshape(B, C, HW)
    if mask_tail:
        pad = hw_pad - HW
        probs_flat = jnp.pad(probs_flat, ((0, 0), (0, 0), (0, pad)))
        feats_flat = jnp.pad(feats_flat, ((0, 0), (0, 0), (0, pad)))

    scale_arr = jnp.asarray(scale, jnp.float32).reshape((1,))

    # VMEM budget hint: double-buffered streamed tiles + resident out block.
    est = (2 * K * t_hw * p_item            # probs tile (x2 buffers)
           + 2 * t_c * t_hw * f_item        # feats tile (x2 buffers)
           + 2 * K * t_c * 4                # resident f32 output block
           + (64 << 10))                    # lane-padded m/s scratch + slack
    vmem_limit = int(min(max(est + (4 << 20), 32 << 20), cfg["vmem_cap"]))

    kernel = functools.partial(_css_kernel, t_hw=t_hw, hw_valid=HW,
                               mask_tail=mask_tail)

    ctx = pl.pallas_call(
        kernel,
        out_shape=jax.ShapeDtypeStruct((B, K, C), jnp.float32),
        grid_spec=pltpu.PrefetchScalarGridSpec(
            num_scalar_prefetch=0,
            grid=(B, n_c, n_hw),                          # HW (reduction) last
            in_specs=[
                # scale scalar lives in SMEM (supports traced scale).
                pl.BlockSpec(memory_space=pltpu.MemorySpace.SMEM),
                # probs: (K, t_hw) tile streamed along HW.
                pl.BlockSpec((pl.Squeezed(), K, t_hw),
                             lambda b, c, n: (b, 0, n)),
                # feats: (t_c, t_hw) slab streamed along HW.
                pl.BlockSpec((pl.Squeezed(), t_c, t_hw),
                             lambda b, c, n: (b, c, n)),
            ],
            # Same out block across the HW axis -> accumulator residency.
            out_specs=pl.BlockSpec((pl.Squeezed(), K, t_c),
                                   lambda b, c, n: (b, 0, c)),
            scratch_shapes=[
                pltpu.VMEM((K, 1), jnp.float32),   # running max
                pltpu.VMEM((K, 1), jnp.float32),   # running sum
            ],
        ),
        compiler_params=pltpu.CompilerParams(
            dimension_semantics=("parallel", "parallel", "arbitrary"),
            vmem_limit_bytes=vmem_limit,
        ),
    )(scale_arr, probs_flat, feats_flat)               # (B, K, C)

    # Tiny glue on the output: (B, K, C) -> (B, C, K, 1).
    return jnp.transpose(ctx, (0, 2, 1))[..., None]


def _css_ref(feats, probs, scale):
    B, K, H, W = probs.shape
    C = feats.shape[1]
    p = probs.reshape(B, K, H * W).astype(jnp.float32)
    f = feats.reshape(B, C, H * W).astype(jnp.float32)
    attn = jax.nn.softmax(scale * p, axis=2)
    ctx = jnp.einsum("bkn,bcn->bkc", attn, f)
    return jnp.transpose(ctx, (0, 2, 1))[..., None]


if __name__ == "__main__":
    key = jax.random.PRNGKey(0)

    def _check(B, C, K, H, W, scale, **kw):
        kf, kp = jax.random.split(jax.random.fold_in(key, B * 7919 + C + H))
        feats = jax.random.normal(kf, (B, C, H, W), dtype=jnp.float32)
        probs = jax.random.normal(kp, (B, K, H, W), dtype=jnp.float32)
        out = jax.block_until_ready(css_forward(feats, probs, scale, **kw))
        ref = _css_ref(feats, probs, scale)
        assert out.shape == (B, C, K, 1), out.shape
        assert jnp.allclose(out, ref, atol=1e-5, rtol=1e-5), "mismatch vs reference"

    # 1) Streaming path: HW=256 split into two 128-column tiles.
    _check(2, 32, 4, 16, 16, 2.0, t_hw=128)
    # 2) Channel-split (megacore-style) path: C=256 -> two 128-channel blocks.
    _check(1, 256, 5, 16, 16, 1.5, t_hw=128, t_c=128)
    # 3) HW not a multiple of 128 -> wrapper pad + in-kernel tail mask.
    _check(2, 32, 4, 10, 10, 2.0)

    print("KERNEL_OK")
</pallas_src>

<mosaic_0001>
module attributes {stable_mosaic.version = 11 : i64} {
  func.func @_css_kernel(%arg0: i32, %arg1: i32, %arg2: i32, %arg3: memref<1xf32, #tpu.memory_space<smem>>, %arg4: memref<1x4x128xf32, #tpu.memory_space<vmem>>, %arg5: memref<1x32x128xf32, #tpu.memory_space<vmem>>, %arg6: memref<1x4x32xf32, #tpu.memory_space<vmem>>, %arg7: memref<4x1xf32, #tpu.memory_space<vmem>>, %arg8: memref<4x1xf32, #tpu.memory_space<vmem>>) attributes {dimension_semantics = [#tpu.dimension_semantics<parallel>, #tpu.dimension_semantics<parallel>, #tpu.dimension_semantics<arbitrary>], iteration_bounds = array<i64: 2, 1, 2>, scalar_prefetch = 0 : i64, scratch_operands = 2 : i64, tpu.core_type = #tpu.core_type<tc>, window_params = [{transform_indices = @transform_0, window_bounds = array<i64: 1>}, {transform_indices = @transform_1, window_bounds = array<i64: 1, 4, 128>}, {transform_indices = @transform_2, window_bounds = array<i64: 1, 32, 128>}, {transform_indices = @transform_3, window_bounds = array<i64: 1, 4, 32>}]} {
    %c0 = arith.constant 0 : index
    %0 = memref.load %arg3[%c0] : memref<1xf32, #tpu.memory_space<smem>>
    %c0_i32 = arith.constant 0 : i32
    %1 = arith.cmpi eq, %arg2, %c0_i32 : i32
    %2 = arith.extui %1 : i1 to i32
    %c0_i32_0 = arith.constant 0 : i32
    %3 = arith.cmpi ne, %2, %c0_i32_0 : i32
    scf.if %3 {
      %cst_24 = arith.constant -3.40282347E+38 : f32
      %38 = vector.broadcast %cst_24 : f32 to vector<4x1xf32>
      %c0_25 = arith.constant 0 : index
      %c0_26 = arith.constant 0 : index
      %39 = vector.load %arg7[%c0_25, %c0_26] : memref<4x1xf32, #tpu.memory_space<vmem>>, vector<4x1xf32>
      tpu.vector_store %arg7[%c0_25, %c0_26], %38 {strides = array<i32>} : memref<4x1xf32, #tpu.memory_space<vmem>>, vector<4x1xf32>,
      %cst_27 = arith.constant 0.000000e+00 : f32
      %40 = vector.broadcast %cst_27 : f32 to vector<4x1xf32>
      %c0_28 = arith.constant 0 : index
      %c0_29 = arith.constant 0 : index
      %41 = vector.load %arg8[%c0_28, %c0_29] : memref<4x1xf32, #tpu.memory_space<vmem>>, vector<4x1xf32>
      tpu.vector_store %arg8[%c0_28, %c0_29], %40 {strides = array<i32>} : memref<4x1xf32, #tpu.memory_space<vmem>>, vector<4x1xf32>,
      %cst_30 = arith.constant 0.000000e+00 : f32
      %42 = vector.broadcast %cst_30 : f32 to vector<4x32xf32>
      %c0_31 = arith.constant 0 : index
      %c0_32 = arith.constant 0 : index
      %c0_33 = arith.constant 0 : index
      %43 = vector.load %arg6[%c0_31, %c0_32, %c0_33] : memref<1x4x32xf32, #tpu.memory_space<vmem>>, vector<1x4x32xf32>
      %44 = vector.shape_cast %43 : vector<1x4x32xf32> to vector<4x32xf32>
      %45 = vector.shape_cast %42 : vector<4x32xf32> to vector<1x4x32xf32>
      tpu.vector_store %arg6[%c0_31, %c0_32, %c0_33], %45 {strides = array<i32>} : memref<1x4x32xf32, #tpu.memory_space<vmem>>, vector<1x4x32xf32>,
    } else {
    }
    %c0_1 = arith.constant 0 : index
    %c0_2 = arith.constant 0 : index
    %c0_3 = arith.constant 0 : index
    %4 = vector.load %arg4[%c0_1, %c0_2, %c0_3] : memref<1x4x128xf32, #tpu.memory_space<vmem>>, vector<1x4x128xf32>
    %5 = vector.shape_cast %4 : vector<1x4x128xf32> to vector<4x128xf32>
    %6 = vector.broadcast %0 : f32 to vector<4x128xf32>
    %7 = arith.mulf %6, %5 : vector<4x128xf32>
    %c0_4 = arith.constant 0 : index
    %c0_5 = arith.constant 0 : index
    %8 = vector.load %arg7[%c0_4, %c0_5] : memref<4x1xf32, #tpu.memory_space<vmem>>, vector<4x1xf32>
    %cst = arith.constant dense<0xFF800000> : vector<4xf32>
    %9 = vector.multi_reduction <maximumf>, %7, %cst [1] : vector<4x128xf32> to vector<4xf32>
    %10 = vector.shape_cast %9 : vector<4xf32> to vector<4x1xf32>
    %11 = arith.maximumf %8, %10 : vector<4x1xf32>
    %12 = arith.subf %8, %11 : vector<4x1xf32>
    %13 = math.exp %12 : vector<4x1xf32>
    %14 = vector.broadcast %11 : vector<4x1xf32> to vector<4x128xf32>
    %15 = arith.subf %7, %14 : vector<4x128xf32>
    %16 = math.exp %15 : vector<4x128xf32>
    %c0_6 = arith.constant 0 : index
    %c0_7 = arith.constant 0 : index
    %17 = vector.load %arg8[%c0_6, %c0_7] : memref<4x1xf32, #tpu.memory_space<vmem>>, vector<4x1xf32>
    %18 = arith.mulf %13, %17 : vector<4x1xf32>
    %cst_8 = arith.constant dense<0.000000e+00> : vector<4xf32>
    %19 = vector.multi_reduction <add>, %16, %cst_8 [1] : vector<4x128xf32> to vector<4xf32>
    %20 = vector.shape_cast %19 : vector<4xf32> to vector<4x1xf32>
    %21 = arith.addf %18, %20 : vector<4x1xf32>
    %c0_9 = arith.constant 0 : index
    %c0_10 = arith.constant 0 : index
    %22 = vector.load %arg8[%c0_9, %c0_10] : memref<4x1xf32, #tpu.memory_space<vmem>>, vector<4x1xf32>
    tpu.vector_store %arg8[%c0_9, %c0_10], %21 {strides = array<i32>} : memref<4x1xf32, #tpu.memory_space<vmem>>, vector<4x1xf32>,
    %c0_11 = arith.constant 0 : index
    %c0_12 = arith.constant 0 : index
    %23 = vector.load %arg7[%c0_11, %c0_12] : memref<4x1xf32, #tpu.memory_space<vmem>>, vector<4x1xf32>
    tpu.vector_store %arg7[%c0_11, %c0_12], %11 {strides = array<i32>} : memref<4x1xf32, #tpu.memory_space<vmem>>, vector<4x1xf32>,
    %c0_13 = arith.constant 0 : index
    %c0_14 = arith.constant 0 : index
    %c0_15 = arith.constant 0 : index
    %24 = vector.load %arg5[%c0_13, %c0_14, %c0_15] : memref<1x32x128xf32, #tpu.memory_space<vmem>>, vector<1x32x128xf32>
    %25 = vector.shape_cast %24 : vector<1x32x128xf32> to vector<32x128xf32>
    %cst_16 = arith.constant dense<0.000000e+00> : vector<4x32xf32>
    %26 = tpu.matmul %16, %25, %cst_16 {dimension_numbers = #tpu.dot_dimension_numbers<[1], [1], [0], [0], [0, 0, 1, 0], [], []>} : vector<4x128xf32>, vector<32x128xf32>, vector<4x32xf32> -> vector<4x32xf32>
    %c0_17 = arith.constant 0 : index
    %c0_18 = arith.constant 0 : index
    %c0_19 = arith.constant 0 : index
    %27 = vector.load %arg6[%c0_17, %c0_18, %c0_19] : memref<1x4x32xf32, #tpu.memory_space<vmem>>, vector<1x4x32xf32>
    %28 = vector.shape_cast %27 : vector<1x4x32xf32> to vector<4x32xf32>
    %29 = vector.broadcast %13 : vector<4x1xf32> to vector<4x32xf32>
    %30 = arith.mulf %29, %28 : vector<4x32xf32>
    %31 = arith.addf %30, %26 : vector<4x32xf32>
    %c0_20 = arith.constant 0 : index
    %c0_21 = arith.constant 0 : index
    %c0_22 = arith.constant 0 : index
    %32 = vector.load %arg6[%c0_20, %c0_21, %c0_22] : memref<1x4x32xf32, #tpu.memory_space<vmem>>, vector<1x4x32xf32>
    %33 = vector.shape_cast %32 : vector<1x4x32xf32> to vector<4x32xf32>
    %34 = vector.shape_cast %31 : vector<4x32xf32> to vector<1x4x32xf32>
    tpu.vector_store %arg6[%c0_20, %c0_21, %c0_22], %34 {strides = array<i32>} : memref<1x4x32xf32, #tpu.memory_space<vmem>>, vector<1x4x32xf32>,
    %c1_i32 = arith.constant 1 : i32
    %35 = arith.cmpi eq, %arg2, %c1_i32 : i32
    %36 = arith.extui %35 : i1 to i32
    %c0_i32_23 = arith.constant 0 : i32
    %37 = arith.cmpi ne, %36, %c0_i32_23 : i32
    scf.if %37 {
      %c0_24 = arith.constant 0 : index
      %c0_25 = arith.constant 0 : index
      %c0_26 = arith.constant 0 : index
      %38 = vector.load %arg6[%c0_24, %c0_25, %c0_26] : memref<1x4x32xf32, #tpu.memory_space<vmem>>, vector<1x4x32xf32>
      %39 = vector.shape_cast %38 : vector<1x4x32xf32> to vector<4x32xf32>
      %c0_27 = arith.constant 0 : index
      %c0_28 = arith.constant 0 : index
      %40 = vector.load %arg8[%c0_27, %c0_28] : memref<4x1xf32, #tpu.memory_space<vmem>>, vector<4x1xf32>
      %41 = tpu.reciprocal %40 : vector<4x1xf32> -> vector<4x1xf32>
      %42 = vector.broadcast %41 : vector<4x1xf32> to vector<4x32xf32>
      %43 = arith.mulf %39, %42 : vector<4x32xf32>
      %c0_29 = arith.constant 0 : index
      %c0_30 = arith.constant 0 : index
      %c0_31 = arith.constant 0 : index
      %44 = vector.load %arg6[%c0_29, %c0_30, %c0_31] : memref<1x4x32xf32, #tpu.memory_space<vmem>>, vector<1x4x32xf32>
      %45 = vector.shape_cast %44 : vector<1x4x32xf32> to vector<4x32xf32>
      %46 = vector.shape_cast %43 : vector<4x32xf32> to vector<1x4x32xf32>
      tpu.vector_store %arg6[%c0_29, %c0_30, %c0_31], %46 {strides = array<i32>} : memref<1x4x32xf32, #tpu.memory_space<vmem>>, vector<1x4x32xf32>,
    } else {
    }
    return
  }
  func.func @transform_0(%arg0: i32, %arg1: i32, %arg2: i32) -> i32 {
    %c0_i32 = arith.constant 0 : i32
    %c0_i32_0 = arith.constant 0 : i32
    return %c0_i32 : i32
  }
  func.func @transform_1(%arg0: i32, %arg1: i32, %arg2: i32) -> (i32, i32, i32) {
    %c0_i32 = arith.constant 0 : i32
    %c0_i32_0 = arith.constant 0 : i32
    return %arg0, %c0_i32, %arg2 : i32, i32, i32
  }
  func.func @transform_2(%arg0: i32, %arg1: i32, %arg2: i32) -> (i32, i32, i32) {
    %c0_i32 = arith.constant 0 : i32
    return %arg0, %arg1, %arg2 : i32, i32, i32
  }
  func.func @transform_3(%arg0: i32, %arg1: i32, %arg2: i32) -> (i32, i32, i32) {
    %c0_i32 = arith.constant 0 : i32
    %c0_i32_0 = arith.constant 0 : i32
    return %arg0, %c0_i32, %arg1 : i32, i32, i32
  }
}

</mosaic_0001>

<llo_original>
// kernel: tpu_custom_call.1
$region0: #{tpu_custom_call.1}
  #allocation0 [shape = 'u32[]', space=smem, size = 0x4, offset = 0x4, fixed_abs, tag = 'smem constant byte address 0x4 - core index']
  #allocation1 [shape = 'u32[144,128]{1,0:T(1,128)}', space=vmem, size = 0x12000, scoped, tag = 'internal scratch']
  #allocation2 [shape = 'f32[4,1]{1,0:T(4,128)}', space=vmem, size = 0x800, scoped, tag = 'scratch operand']
  #allocation3 [shape = 'f32[4,1]{1,0:T(4,128)}', space=vmem, size = 0x800, scoped, tag = 'scratch operand']
  #allocation4 [shape = 'f32[1]{0:T(128)S(6)}', space=smem, size = 0x200, scoped, tag = 'scoped memory for tpu_custom_call.1']
  %s0 = inlined_call_operand.<no memory space> [shape: f32[1], index: 0, kind: input, shape index: {}]
  %s1 = inlined_call_operand.hbm [shape: f32[2,4,256], index: 1, kind: input, shape index: {}]
  %s2 = inlined_call_operand.hbm [shape: f32[2,32,256], index: 2, kind: input, shape index: {}]
  %s3 = inlined_call_operand.hbm [shape: f32[2,4,32], index: 3, kind: output, shape index: {}]
  %s4 = sld [smem:[#allocation0]]
  $region61: #{tpu_custom_call.1} parent=0
    _
  %s6 = ssub.s32 1, %s4
  %s7 = scalar_select 0, %s6, %s4
  %8 = sst [smem:[#allocation4]] %s0
  $region1: #{tpu_custom_call.1} parent=0
    #allocation5 [shape = 'u8[4096]{0}', space=vmem, size = 0x1000, scoped, tag = 'input window, operand 1']
    #allocation6 [shape = 's32[2]{0}', space=sflag, size = 0x8, scoped, tag = 'scoped memory for tpu_custom_call.1']
    #allocation7 [shape = 's32[2]{0}', space=sflag, size = 0x8, scoped, tag = 'scoped memory for tpu_custom_call.1']
    #allocation8 [shape = 'u8[32768]{0}', space=vmem, size = 0x8000, scoped, tag = 'input window, operand 2']
    #allocation9 [shape = 's32[2]{0}', space=sflag, size = 0x8, scoped, tag = 'scoped memory for tpu_custom_call.1']
    #allocation10 [shape = 'u8[4096]{0}', space=vmem, size = 0x1000, scoped, tag = 'output window, operand 0']
    %9 = vsyncpa [#allocation6], 0
    %s10 = scalar_lea.sflag [#allocation6], 1
    %11 = vsyncpa %s10, 0
    %12 = vsyncpa [#allocation9], 0
    %s13 = scalar_lea.sflag [#allocation9], 1
    %14 = vsyncpa %s13, 0
    %15 = vsyncpa [#allocation7], 0
    %s16 = scalar_lea.sflag [#allocation7], 1
    %17 = vsyncpa %s16, 0
    loop: start=0, step=1, limit=6
    $region2: #{tpu_custom_call.1} parent=1 // loop_pre_header
      _
    $region3: #{tpu_custom_call.1} parent=1 // loop_header
      %s19 = sphi 0, %s23
      %p20 = scmp.ge.s32.totalorder %s19, 6
      %s26 = sphi 0, %s45
      %s27 = sphi 0, %s41
      %s28 = sphi 0, %s37
      %s29 = sphi 0, %s26
      %s30 = sphi 0, %s27
      %s31 = sphi 0, %s28
      %s32 = sphi 0, %s29
      %s33 = sphi 0, %s30
      %s34 = sphi 0, %s31
      %s46 = sphi 0, %s46
      %s48 = sphi 0, %s46
      %s49 = sphi 0, %s48
      %s63 = sphi 0, %s49
      %s71 = sphi 0, %s73
      %s74 = sphi 0, %s71
      %s75 = sphi 0, %s74
      %s91 = sphi 0, %s75
      %s101 = sphi 0, %s103
      %s104 = sphi 0, %s101
      %s105 = sphi 0, %s104
      %s121 = sphi 0, %s105
      %s129 = sphi 0, %s131
      %s132 = sphi 0, %s129
      %s133 = sphi 0, %s132
      %s149 = sphi 0, %s133
    $region4: #{tpu_custom_call.1} parent=1 // loop_header_branch
      %22 = sbr.rel (%p20) target = $region8
    $region5: #{tpu_custom_call.1} parent=1 // loop_body
      %s24 = ssub.s32 %s19, 1
      %s25 = ssub.s32 %s19, 2
      %s35 = sadd.s32 1, %s28
      %p36 = scmp.ge.s32.totalorder %s35, 2
      %s37 = scalar_select %p36, 0, %s35
      %s38 = sadd.s32 1, %s27
      %s39 = scalar_select %p36, %s38, %s27
      %p40 = scmp.ge.s32.totalorder %s39, 1
      %s41 = scalar_select %p40, 0, %s39
      %s42 = sadd.s32 1, %s26
      %s43 = scalar_select %p40, %s42, %s26
      %p44 = scmp.ge.s32.totalorder %s43, 2
      %s45 = scalar_select %p44, 0, %s43
      %s47 = sadd.s32 %s46, 1
      %p50 = scmp.eq.s32.totalorder %s19, 3
      %p51 = scmp.ne.s32.totalorder %s46, %s48
      %p52 = scmp.eq.s32.totalorder %s19, 0
      %p53 = por %p51, %p52
      %p54 = scmp.ne.s32.totalorder %s46, %s48
      %p55 = scmp.eq.s32.totalorder %s24, 3
      %p56 = por %p54, %p55
      %p57 = scmp.ne.s32.totalorder %s48, %s49
      %p58 = scmp.eq.s32.totalorder %s24, 0
      %p59 = por %p57, %p58
      %p60 = scmp.ne.s32.totalorder %s48, %s49
      %p61 = scmp.eq.s32.totalorder %s25, 3
      %p62 = por %p60, %p61
      %p64 = scmp.ne.s32.totalorder %s49, %s63
      %p65 = scmp.eq.s32.totalorder %s25, 0
      %p66 = por %p64, %p65
      %s67 = ssub.s32 %s26, %s45
      %s68 = ssub.s32 %s28, %s37
      %s69 = sor.u32 %s67, %s68
      %p70 = scmp.eq.s32.totalorder %s69, 0
      %s72 = sadd.s32 %s71, 1
      %s73 = scalar_select %p70, %s71, %s72
      %p76 = pneg %p70
      %p77 = scmp.eq.s32.totalorder %s19, 3
      %p78 = por %p76, %p77
      %p79 = scmp.ne.s32.totalorder %s71, %s74
      %p80 = scmp.eq.s32.totalorder %s19, 0
      %p81 = por %p79, %p80
      %p82 = scmp.ne.s32.totalorder %s71, %s74
      %p83 = scmp.eq.s32.totalorder %s24, 3
      %p84 = por %p82, %p83
      %p85 = scmp.ne.s32.totalorder %s74, %s75
      %p86 = scmp.eq.s32.totalorder %s24, 0
      %p87 = por %p85, %p86
      %p88 = scmp.ne.s32.totalorder %s74, %s75
      %p89 = scmp.eq.s32.totalorder %s25, 3
      %p90 = por %p88, %p89
      %p92 = scmp.ne.s32.totalorder %s75, %s91
      %p93 = scmp.eq.s32.totalorder %s25, 0
      %p94 = por %p92, %p93
      %s95 = ssub.s32 %s26, %s45
      %s96 = ssub.s32 %s27, %s41
      %s97 = sor.u32 %s95, %s96
      %s98 = ssub.s32 %s28, %s37
      %s99 = sor.u32 %s97, %s98
      %p100 = scmp.eq.s32.totalorder %s99, 0
      %s102 = sadd.s32 %s101, 1
      %s103 = scalar_select %p100, %s101, %s102
      %p106 = pneg %p100
      %p107 = scmp.eq.s32.totalorder %s19, 3
      %p108 = por %p106, %p107
      %p109 = scmp.ne.s32.totalorder %s101, %s104
      %p110 = scmp.eq.s32.totalorder %s19, 0
      %p111 = por %p109, %p110
      %p112 = scmp.ne.s32.totalorder %s101, %s104
      %p113 = scmp.eq.s32.totalorder %s24, 3
      %p114 = por %p112, %p113
      %p115 = scmp.ne.s32.totalorder %s104, %s105
      %p116 = scmp.eq.s32.totalorder %s24, 0
      %p117 = por %p115, %p116
      %p118 = scmp.ne.s32.totalorder %s104, %s105
      %p119 = scmp.eq.s32.totalorder %s25, 3
      %p120 = por %p118, %p119
      %p122 = scmp.ne.s32.totalorder %s105, %s121
      %p123 = scmp.eq.s32.totalorder %s25, 0
      %p124 = por %p122, %p123
      %s125 = ssub.s32 %s26, %s45
      %s126 = ssub.s32 %s27, %s41
      %s127 = sor.u32 %s125, %s126
      %p128 = scmp.eq.s32.totalorder %s127, 0
      %s130 = sadd.s32 %s129, 1
      %s131 = scalar_select %p128, %s129, %s130
      %p134 = pneg %p128
      %p135 = scmp.eq.s32.totalorder %s19, 3
      %p136 = por %p134, %p135
      %p137 = scmp.ne.s32.totalorder %s129, %s132
      %p138 = scmp.eq.s32.totalorder %s19, 0
      %p139 = por %p137, %p138
      %p140 = scmp.ne.s32.totalorder %s129, %s132
      %p141 = scmp.eq.s32.totalorder %s24, 3
      %p142 = por %p140, %p141
      %p143 = scmp.ne.s32.totalorder %s132, %s133
      %p144 = scmp.eq.s32.totalorder %s24, 0
      %p145 = por %p143, %p144
      %p146 = scmp.ne.s32.totalorder %s132, %s133
      %p147 = scmp.eq.s32.totalorder %s25, 3
      %p148 = por %p146, %p147
      %p150 = scmp.ne.s32.totalorder %s133, %s149
      %p151 = scmp.eq.s32.totalorder %s25, 0
      %p152 = por %p150, %p151
      %p153 = scmp.le.s32.totalorder 1, %s19
      %p154 = scmp.lt.s32.totalorder %s19, 5
      %p155 = pnand %p153, %p154
      %p156 = pneg %p155
      // Predicated region
      $region9: #{tpu_custom_call.1} parent=5 // pred_check
        _
      $region10: #{tpu_custom_call.1} parent=5 // pred_check_branch
        %158 = sbr.rel (%p155) target = $region12
      $region11: #{tpu_custom_call.1} parent=5 // pred_region
        %s159 = ssub.s32 %s19, 1
        // Predicated region
        $region13: #{tpu_custom_call.1} parent=11 // pred_check
          %p160 = pneg %p59
        $region14: #{tpu_custom_call.1} parent=11 // pred_check_branch
          %162 = sbr.rel (%p160) target = $region16
        $region15: #{tpu_custom_call.1} parent=11 // pred_region
          _
        $region16: #{tpu_custom_call.1} parent=11 // pred_fallthru
          _
      $region12: #{tpu_custom_call.1} parent=5 // pred_fallthru
        _
      %p163 = scmp.lt.s32.totalorder %s19, 4
      // Predicated region
      $region17: #{tpu_custom_call.1} parent=5 // pred_check
        %p164 = pneg %p163
      $region18: #{tpu_custom_call.1} parent=5 // pred_check_branch
        %166 = sbr.rel (%p164) target = $region20
      $region19: #{tpu_custom_call.1} parent=5 // pred_region
        // Predicated region
        $region21: #{tpu_custom_call.1} parent=19 // pred_check
          %p167 = pneg %p81
        $region22: #{tpu_custom_call.1} parent=19 // pred_check_branch
          %169 = sbr.rel (%p167) target = $region24
        $region23: #{tpu_custom_call.1} parent=19 // pred_region
          %s170 = sand.u32 %s71, 1
          %s171 = scalar_lea.sflag [#allocation6], %s170
          %s172 = sand.u32 %s71, 1
          %s173 = smul.addr %s172, 4
          %s174 = scalar_lea.vmem [#allocation5], %s173
          %s176 = ssub.s32 64, 64
          %177 = vsyncadd %s171, %s176
          %s178 = smul.addr %s26, 2
          %s179 = sadd.s32 %s28, %s178
          %s180 = smul.addr %s179, 64
          %s181 = scalar_lea.hbm %s1, %s180
          %s183 = sshll.u32 %s174, 4
          %s184 = int_to_ptr.vmem [resolvable:$true] %s183
          %186 = dma.hbm_to_vmem [thread:$0]  %s181, 64, %s184, %s171
        $region24: #{tpu_custom_call.1} parent=19 // pred_fallthru
          _
        // Predicated region
        $region25: #{tpu_custom_call.1} parent=19 // pred_check
          %p187 = pneg %p111
        $region26: #{tpu_custom_call.1} parent=19 // pred_check_branch
          %189 = sbr.rel (%p187) target = $region28
        $region27: #{tpu_custom_call.1} parent=19 // pred_region
          %s190 = sand.u32 %s101, 1
          %s191 = scalar_lea.sflag [#allocation9], %s190
          %s192 = sand.u32 %s101, 1
          %s193 = smul.addr %s192, 32
          %s194 = scalar_lea.vmem [#allocation8], %s193
          %s195 = smul.u32 4, %s27
          %s197 = ssub.s32 512, 512
          %198 = vsyncadd %s191, %s197
          %s199 = smul.addr %s195, 2
          %s200 = sadd.s32 %s28, %s199
          %s201 = smul.addr %s26, 8
          %s202 = sadd.s32 %s200, %s201
          %s203 = smul.addr %s202, 128
          %s204 = scalar_lea.hbm %s2, %s203
          %s205 = sshll.u32 %s194, 4
          %s206 = int_to_ptr.vmem [resolvable:$true] %s205
          %211 = dma.hbm_to_vmem [thread:$0]  %s204, 512, %s206, %s191, 256, 128, 8
        $region28: #{tpu_custom_call.1} parent=19 // pred_fallthru
          _
      $region20: #{tpu_custom_call.1} parent=5 // pred_fallthru
        _
      %p212 = scmp.le.s32.totalorder 1, %s19
      %p213 = scmp.lt.s32.totalorder %s19, 5
      %p214 = pnand %p212, %p213
      %p215 = pneg %p214
      // Predicated region
      $region29: #{tpu_custom_call.1} parent=5 // pred_check
        _
      $region30: #{tpu_custom_call.1} parent=5 // pred_check_branch
        %217 = sbr.rel (%p214) target = $region32
      $region31: #{tpu_custom_call.1} parent=5 // pred_region
        %s218 = ssub.s32 %s19, 1
        %s219 = sand.u32 %s74, 1
        %s220 = scalar_lea.sflag [#allocation6], %s219
        %s221 = sand.u32 %s74, 1
        %s222 = smul.addr %s221, 4
        %s223 = scalar_lea.vmem [#allocation5], %s222
        // Predicated region
        $region33: #{tpu_custom_call.1} parent=31 // pred_check
          %p224 = pneg %p87
        $region34: #{tpu_custom_call.1} parent=31 // pred_check_branch
          %226 = sbr.rel (%p224) target = $region36
        $region35: #{tpu_custom_call.1} parent=31 // pred_region
          %227 = dma.done %s220, 64
        $region36: #{tpu_custom_call.1} parent=31 // pred_fallthru
          _
        %s228 = sand.u32 %s104, 1
        %s229 = scalar_lea.sflag [#allocation9], %s228
        %s230 = sand.u32 %s104, 1
        %s231 = smul.addr %s230, 32
        %s232 = scalar_lea.vmem [#allocation8], %s231
        // Predicated region
        $region37: #{tpu_custom_call.1} parent=31 // pred_check
          %p233 = pneg %p117
        $region38: #{tpu_custom_call.1} parent=31 // pred_check_branch
          %235 = sbr.rel (%p233) target = $region40
        $region39: #{tpu_custom_call.1} parent=31 // pred_region
          %236 = dma.done %s229, 512
        $region40: #{tpu_custom_call.1} parent=31 // pred_fallthru
          _
        %p237 = pneg %p59
        %p238 = pneg %p56
        %s239 = sand.u32 %s74, 1
        %s240 = scalar_lea.sflag [#allocation6], %s239
        %s241 = sand.u32 %s74, 1
        %s242 = smul.addr %s241, 4
        %s243 = scalar_lea.vmem [#allocation5], %s242
        %p244 = pneg %p87
        %p245 = pneg %p84
        %s246 = sand.u32 %s104, 1
        %s247 = scalar_lea.sflag [#allocation9], %s246
        %s248 = sand.u32 %s104, 1
        %s249 = smul.addr %s248, 32
        %s250 = scalar_lea.vmem [#allocation8], %s249
        %p251 = pneg %p117
        %p252 = pneg %p114
        %p253 = pneg %p145
        %p254 = pneg %p142
        %s255 = sand.u32 %s132, 1
        %s256 = scalar_lea.sflag [#allocation7], %s255
        %s257 = sand.u32 %s132, 1
        %s258 = smul.addr %s257, 4
        %s259 = scalar_lea.vmem [#allocation10], %s258
        %s260 = smul.u32 4, %s30
        %s261 = sld [smem:[#allocation4]]
        %p262 = scmp.eq.s32.totalorder %s31, 0
        // Predicated region
        $region41: #{tpu_custom_call.1} parent=31 // pred_check
          %p263 = pneg %p262
        $region42: #{tpu_custom_call.1} parent=31 // pred_check_branch
          %265 = sbr.rel (%p263) target = $region44
        $region43: #{tpu_custom_call.1} parent=31 // pred_region
          %vm266 = vcmask 3072
          %267 = vst.msk [vmem:[#allocation2] sm:$0xf] %vm266, -3.4028235e+38
          %268 = vst.msk [vmem:[#allocation3] sm:$0xf] %vm266, 0.0
          %vm269 = vcmask 257024
          %270 = vst.msk [vmem:[%s259] sm:$0xf] %vm269, 0.0
        $region44: #{tpu_custom_call.1} parent=31 // pred_fallthru
          _
        %v271 = vld [vmem:[%s223] sm:$0xf]
        %v272 = vstv %s261
        %v273 = vmul.f32 %v272, %v271
        %v274 = vld [vmem:[#allocation2] sm:$0xf]
        %vm275 = vcmask 1043456
        %v276 = vsel %vm275, %v273, -inf
        %277 = vmax.xlane.f32.xlu0 %v276
        %v278 = vpop.xlane.xlu0 %277
        %v279 = vmax.f32 %v274, %v278
        %v280 = vsub.f32 %v274, %v279
        %v281 = vmul.f32 %v280, 1.442695
        %v282 = vpow.pop %v281
        %284 = vset.pattern.permute.xlu0 0
        %285 = vperm.xlu0 %284, %v279
        %v286 = vpop.permute.xlu0 %285
        %v288 = vsub.f32 %v273, %v286
        %v289 = vmul.f32 %v288, 1.442695
        %v290 = vpow.pop %v289
        %v291 = vld [vmem:[#allocation3] sm:$0xf]
        %v292 = vmul.f32 %v282, %v291
        %v293 = vsel %vm275, %v290, 0.0
        %294 = vadd.xlane.f32.xlu0 %v293
        %v295 = vpop.xlane.xlu0 %294
        %v296 = vadd.f32 %v292, %v295
        %vm297 = vcmask 3072
        %298 = vst.msk [vmem:[#allocation3] sm:$0xf] %vm297, %v296
        %299 = vst.msk [vmem:[#allocation2] sm:$0xf] %vm297, %v279
        %v300 = vld [vmem:[%s232] sm:$0xff]
        %v301 = vld [vmem:[%s232 + $0x8] sm:$0xff]
        %v302 = vld [vmem:[%s232 + $0x10] sm:$0xff]
        %v303 = vld [vmem:[%s232 + $0x18] sm:$0xff]
        %304 = vmatprep.subr.mxu0 0.0
        %305 = vmatpush1.xpose.msra.mxu0 0.0
        %306 = vmatprep.subr.mxu0 0.0
        %307 = vmatpush1.xpose.msra.mxu0 0.0
        %308 = vmatprep.subr.mxu0 0.0
        %309 = vmatpush1.xpose.msra.mxu0 0.0
        %310 = vmatprep.subr.mxu0 0.0
        %311 = vmatpush1.xpose.msra.mxu0 0.0
        %312 = vmatprep.subr.mxu0 0.0
        %313 = vmatpush1.xpose.msra.mxu0 0.0
        %314 = vmatprep.subr.mxu0 0.0
        %315 = vmatpush1.xpose.msra.mxu0 0.0
        %316 = vmatprep.subr.mxu0 0.0
        %317 = vmatpush1.xpose.msra.mxu0 0.0
        %318 = vmatprep.subr.mxu0 0.0
        %319 = vmatpush1.xpose.msra.mxu0 0.0
        %320 = vmatprep.subr.mxu0 0.0
        %321 = vmatpush1.xpose.msra.mxu0 0.0
        %322 = vmatprep.subr.mxu0 0.0
        %323 = vmatpush1.xpose.msra.mxu0 0.0
        %324 = vmatprep.subr.mxu0 0.0
        %325 = vmatpush1.xpose.msra.mxu0 0.0
        %326 = vmatprep.subr.mxu0 0.0
        %327 = vmatpush1.xpose.msra.mxu0 0.0
        %328 = vmatprep.subr.mxu0 0.0
        %329 = vmatpush1.xpose.msra.mxu0 %v303
        %330 = vmatprep.subr.mxu0 0.0
        %331 = vmatpush1.xpose.msra.mxu0 %v302
        %332 = vmatprep.subr.mxu0 0.0
        %333 = vmatpush1.xpose.msra.mxu0 %v301
        %334 = vmatprep.subr.mxu0 0.0
        %335 = vmatpush1.xpose.msra.mxu0 %v300
        %336 = vmatprep.subr.mxu0 0.0
        %337 = vmatpush2.xpose.msra.mxu0 0.0
        %338 = vmatprep.subr.mxu0 0.0
        %339 = vmatpush2.xpose.msra.mxu0 0.0
        %340 = vmatprep.subr.mxu0 0.0
        %341 = vmatpush2.xpose.msra.mxu0 0.0
        %342 = vmatprep.subr.mxu0 0.0
        %343 = vmatpush2.xpose.msra.mxu0 0.0
        %344 = vmatprep.subr.mxu0 0.0
        %345 = vmatpush2.xpose.msra.mxu0 0.0
        %346 = vmatprep.subr.mxu0 0.0
        %347 = vmatpush2.xpose.msra.mxu0 0.0
        %348 = vmatprep.subr.mxu0 0.0
        %349 = vmatpush2.xpose.msra.mxu0 0.0
        %350 = vmatprep.subr.mxu0 0.0
        %351 = vmatpush2.xpose.msra.mxu0 0.0
        %352 = vmatprep.subr.mxu0 0.0
        %353 = vmatpush2.xpose.msra.mxu0 0.0
        %354 = vmatprep.subr.mxu0 0.0
        %355 = vmatpush2.xpose.msra.mxu0 0.0
        %356 = vmatprep.subr.mxu0 0.0
        %357 = vmatpush2.xpose.msra.mxu0 0.0
        %358 = vmatprep.subr.mxu0 0.0
        %359 = vmatpush2.xpose.msra.mxu0 0.0
        %360 = vmatprep.subr.mxu0 0.0
        %361 = vmatpush2.xpose.msra.mxu0 0.0
        %362 = vmatprep.subr.mxu0 0.0
        %363 = vmatpush2.xpose.msra.mxu0 0.0
        %364 = vmatprep.subr.mxu0 0.0
        %365 = vmatpush2.xpose.msra.mxu0 0.0
        %366 = vmatprep.subr.mxu0 0.0
        %367 = vmatpush2.xpose.msra.mxu0 0.0
        %368 = vmatprep.mubr.f32.mxu0 0.0
        %369 = vmatmul.mubr.f32.gmra.mxu0 %v290
        %v370 = vpop.f32.mrf.mxu0
        %v371 = vadd.f32 0.0, %v370
        %v372 = vpop.f32.mrf.mxu0
        %373 = vdwg.mxu0
        %v374 = vld [vmem:[%s259] sm:$0xf]
        %376 = vset.pattern.permute.xlu0 0
        %377 = vperm.xlu0 %376, %v282
        %v378 = vpop.permute.xlu0 %377
        %v380 = vmul.f32 %v378, %v374
        %v381 = vadd.f32 %v380, %v371
        %vm382 = vcmask 257024
        %383 = vst.msk [vmem:[%s259] sm:$0xf] %vm382, %v381
        %p384 = scmp.eq.s32.totalorder %s31, 1
        // Predicated region
        $region45: #{tpu_custom_call.1} parent=31 // pred_check
          %p385 = pneg %p384
        $region46: #{tpu_custom_call.1} parent=31 // pred_check_branch
          %387 = sbr.rel (%p385) target = $region48
        $region47: #{tpu_custom_call.1} parent=31 // pred_region
          %v388 = vld [vmem:[%s259] sm:$0xf]
          %v389 = vld [vmem:[#allocation3] sm:$0xf]
          %v390 = vrcp.pop %v389
          %392 = vset.pattern.permute.xlu0 0
          %393 = vperm.xlu0 %392, %v390
          %v394 = vpop.permute.xlu0 %393
          %v396 = vmul.f32 %v388, %v394
          %397 = vst.msk [vmem:[%s259] sm:$0xf] %vm382, %v396
        $region48: #{tpu_custom_call.1} parent=31 // pred_fallthru
          _
        %s398 = sand.u32 %s132, 1
        %s399 = scalar_lea.sflag [#allocation7], %s398
        %s400 = sand.u32 %s132, 1
        %s401 = smul.addr %s400, 4
        %s402 = scalar_lea.vmem [#allocation10], %s401
        // Predicated region
        $region49: #{tpu_custom_call.1} parent=31 // pred_check
          %p403 = pneg %p142
        $region50: #{tpu_custom_call.1} parent=31 // pred_check_branch
          %405 = sbr.rel (%p403) target = $region52
        $region51: #{tpu_custom_call.1} parent=31 // pred_region
          %s407 = ssub.s32 64, 64
          %408 = vsyncadd %s399, %s407
          %s409 = sadd.s32 %s30, %s29
          %s410 = smul.addr %s409, 64
          %s411 = scalar_lea.hbm %s3, %s410
          %s413 = sshll.u32 %s402, 4
          %s414 = int_to_ptr.vmem [resolvable:$true] %s413
          %416 = dma.vmem_to_hbm [thread:$0]  %s414, 64, %s411, %s399
        $region52: #{tpu_custom_call.1} parent=31 // pred_fallthru
          _
      $region32: #{tpu_custom_call.1} parent=5 // pred_fallthru
        _
      %p417 = scmp.le.s32.totalorder 2, %s19
      // Predicated region
      $region53: #{tpu_custom_call.1} parent=5 // pred_check
        %p418 = pneg %p417
      $region54: #{tpu_custom_call.1} parent=5 // pred_check_branch
        %420 = sbr.rel (%p418) target = $region56
      $region55: #{tpu_custom_call.1} parent=5 // pred_region
        %s421 = ssub.s32 %s19, 2
        // Predicated region
        $region57: #{tpu_custom_call.1} parent=55 // pred_check
          %p422 = pneg %p148
        $region58: #{tpu_custom_call.1} parent=55 // pred_check_branch
          %424 = sbr.rel (%p422) target = $region60
        $region59: #{tpu_custom_call.1} parent=55 // pred_region
          %s425 = sand.u32 %s133, 1
          %s426 = scalar_lea.sflag [#allocation7], %s425
          %s427 = sand.u32 %s133, 1
          %s428 = smul.addr %s427, 4
          %s429 = scalar_lea.vmem [#allocation10], %s428
          %430 = dma.done %s426, 64
        $region60: #{tpu_custom_call.1} parent=55 // pred_fallthru
          _
      $region56: #{tpu_custom_call.1} parent=5 // pred_fallthru
        _
    $region6: #{tpu_custom_call.1} parent=1 // loop_footer
      %s23 = sadd.s32 1, %s19
    $region7: #{tpu_custom_call.1} parent=1 // loop_footer_branch
      %18 = sbr.rel target = $region3
    $region8: #{tpu_custom_call.1} parent=1 // loop_exit
      _
    %431 = vsyncpa [#allocation6], 1
    %s432 = scalar_lea.sflag [#allocation6], 1
    %433 = vsyncpa %s432, 1
    %434 = vsyncpa [#allocation9], 1
    %s435 = scalar_lea.sflag [#allocation9], 1
    %436 = vsyncpa %s435, 1
    %437 = vsyncpa [#allocation7], 1
    %s438 = scalar_lea.sflag [#allocation7], 1
    %439 = vsyncpa %s438, 1

</llo_original>
